<compile_context>
chip_gen: v6e
topology: v6e:2x2x1
jax: 0.10.0
libtpu: 0.0.40
codegen_flags: <defaults>
</compile_context>

<pallas_src>
import math

import jax
import jax.numpy as jnp
from jax import lax
from jax.experimental import pallas as pl
from jax.experimental.pallas import tpu as pltpu


_TARGET_BLOCK_BYTES = 4 * 1024 * 1024          # ~4 MiB blocks: fits every gen
_COMPILER_PARAMS = pltpu.CompilerParams(
    dimension_semantics=("parallel",),          # shard rows across TCs on v7x
    vmem_limit_bytes=48 * 1024 * 1024,
)


def _sublane(dtype):
    # rows-per-vreg packing: 8 for 4-byte, 16 for 2-byte, 32 for 1-byte dtypes
    itemsize = jnp.dtype(dtype).itemsize
    return max(8, 32 // max(1, itemsize))


# ----------------------------------------------------------------------------
# Case 1: normalized axis is the last axis  ->  2-D slab (M, F), F on lanes.
# ----------------------------------------------------------------------------
def _layernorm_last_kernel(x_ref, w_ref, b_ref, o_ref):
    # x_ref: (tm, F); w_ref / b_ref: (1, F); o_ref: (tm, F)
    x = x_ref[...].astype(jnp.float32)
    mean = jnp.mean(x, axis=-1, keepdims=True)
    xc = x - mean
    var = jnp.mean(xc * xc, axis=-1, keepdims=True)     # unbiased=False
    inv_std = lax.rsqrt(var)                            # (tm, 1): tm EUP ops only
    w = w_ref[...].astype(jnp.float32)
    b = b_ref[...].astype(jnp.float32)
    # matches: (x - mean) * (weight / std) + bias
    o_ref[...] = ((xc * inv_std) * w + b).astype(o_ref.dtype)


def _layernorm_last(x2, weight, bias):
    """x2: [M, F]; normalize each row over F, scale/shift per column."""
    M, F = x2.shape
    itemsize = jnp.dtype(x2.dtype).itemsize
    sub = _sublane(x2.dtype)

    # Rows per block: ~4 MiB, multiple of the sublane count, never more than
    # the (sublane-rounded) number of rows we actually have.
    tm = max(sub, (_TARGET_BLOCK_BYTES // max(1, F * itemsize)) // sub * sub)
    tm = min(tm, max(sub, (M // sub) * sub))
    grid = (pl.cdiv(M, tm),)                    # ragged last block is fine

    w2 = weight.reshape(1, F)
    b2 = bias.reshape(1, F)

    return pl.pallas_call(
        _layernorm_last_kernel,
        out_shape=jax.ShapeDtypeStruct((M, F), x2.dtype),
        grid_spec=pltpu.PrefetchScalarGridSpec(
            num_scalar_prefetch=0,
            grid=grid,
            in_specs=[
                pl.BlockSpec((tm, F), lambda i: (i, 0)),
                pl.BlockSpec((1, F), lambda i: (0, 0)),   # stays resident
                pl.BlockSpec((1, F), lambda i: (0, 0)),
            ],
            out_specs=pl.BlockSpec((tm, F), lambda i: (i, 0)),
        ),
        compiler_params=_COMPILER_PARAMS,
    )(x2, w2, b2)


# ----------------------------------------------------------------------------
# Case 2: normalized axis is in the middle  ->  3-D (prefix, F, suffix) blocks,
# reduce over the F (sublane) axis.  Avoids the two full-HBM transposes the
# previous version did in the wrapper.
# ----------------------------------------------------------------------------
def _layernorm_mid_kernel(x_ref, w_ref, b_ref, o_ref):
    # x_ref: (pb, F, S); w_ref / b_ref: (1, F, 1)
    x = x_ref[...].astype(jnp.float32)
    mean = jnp.mean(x, axis=1, keepdims=True)
    xc = x - mean
    var = jnp.mean(xc * xc, axis=1, keepdims=True)      # unbiased=False
    inv_std = lax.rsqrt(var)
    w = w_ref[...].astype(jnp.float32)
    b = b_ref[...].astype(jnp.float32)
    o_ref[...] = ((xc * inv_std) * w + b).astype(o_ref.dtype)


def _layernorm_mid(x3, weight, bias):
    """x3: [prefix, F, suffix]; normalize over axis 1."""
    P, F, S = x3.shape
    itemsize = jnp.dtype(x3.dtype).itemsize
    pb = max(1, _TARGET_BLOCK_BYTES // max(1, F * S * itemsize))
    pb = min(pb, P)
    grid = (pl.cdiv(P, pb),)
    # TODO(synk): if a single (1, F, suffix) slab exceeds VMEM, tile suffix too.

    w3 = weight.reshape(1, F, 1)
    b3 = bias.reshape(1, F, 1)

    return pl.pallas_call(
        _layernorm_mid_kernel,
        out_shape=jax.ShapeDtypeStruct((P, F, S), x3.dtype),
        grid_spec=pltpu.PrefetchScalarGridSpec(
            num_scalar_prefetch=0,
            grid=grid,
            in_specs=[
                pl.BlockSpec((pb, F, S), lambda i: (i, 0, 0)),
                pl.BlockSpec((1, F, 1), lambda i: (0, 0, 0)),
                pl.BlockSpec((1, F, 1), lambda i: (0, 0, 0)),
            ],
            out_specs=pl.BlockSpec((pb, F, S), lambda i: (i, 0, 0)),
        ),
        compiler_params=_COMPILER_PARAMS,
    )(x3, w3, b3)


# ----------------------------------------------------------------------------
# Public wrapper matching the PyTorch module's forward.
# ----------------------------------------------------------------------------
def layer_norm(x, weight=None, bias=None, dim=-1, affine=True):
    if dim < 0:
        dim += x.ndim
    input_shape = x.shape
    prefix = int(math.prod(input_shape[:dim]))
    F = int(input_shape[dim])
    suffix = int(math.prod(input_shape[dim + 1:]))

    if (not affine) or weight is None:
        weight = jnp.ones((F,), x.dtype)
    if (not affine) or bias is None:
        bias = jnp.zeros((F,), x.dtype)

    if suffix == 1:
        # Normalized axis is (effectively) last: pure reshape, no HBM copies.
        out2 = _layernorm_last(x.reshape(prefix, F), weight, bias)
        return out2.reshape(input_shape)

    # dim != last: keep (prefix, F, suffix) layout, no wrapper transposes.
    out3 = _layernorm_mid(x.reshape(prefix, F, suffix), weight, bias)
    return out3.reshape(input_shape)


# ----------------------------------------------------------------------------
# Pure-JAX reference (mirrors the PyTorch forward exactly).
# ----------------------------------------------------------------------------
def _reference(x, weight, bias, dim=-1):
    if dim < 0:
        dim += x.ndim
    shp = x.shape
    imm = (int(math.prod(shp[:dim])), shp[dim], int(math.prod(shp[dim + 1:])))
    xi = x.reshape(imm).astype(jnp.float32)
    mean = xi.mean(1, keepdims=True)
    std = jnp.sqrt(((xi - mean) ** 2).mean(1, keepdims=True))
    w = weight.reshape(1, -1, 1).astype(jnp.float32)
    b = bias.reshape(1, -1, 1).astype(jnp.float32)
    return ((xi - mean) * (w / std) + b).reshape(shp).astype(x.dtype)


if __name__ == "__main__":
    key = jax.random.PRNGKey(0)

    # --- test 1: dim = -1 (single block) --------------------------------
    batch, seq, hidden = 2, 8, 32
    k1, k2, k3 = jax.random.split(key, 3)
    x1 = jax.random.normal(k1, (batch, seq, hidden), dtype=jnp.float32)
    w1 = jnp.ones((hidden,), jnp.float32) + 0.01 * jnp.arange(hidden, dtype=jnp.float32)
    b1 = jnp.zeros((hidden,), jnp.float32) + 0.1
    out1 = jax.block_until_ready(layer_norm(x1, w1, b1, dim=-1, affine=True))
    ref1 = _reference(x1, w1, b1, dim=-1)
    assert out1.shape == x1.shape and out1.dtype == x1.dtype
    assert jnp.allclose(out1, ref1, atol=1e-5, rtol=1e-5)

    # --- test 2: dim = -1, non-multiple row count (ragged last block) ---
    x2 = jax.random.normal(k2, (3, 100, 256), dtype=jnp.float32)
    w2 = jnp.ones((256,), jnp.float32) + 0.001 * jnp.arange(256, dtype=jnp.float32)
    b2 = jnp.full((256,), 0.05, jnp.float32)
    out2 = jax.block_until_ready(layer_norm(x2, w2, b2, dim=-1, affine=True))
    ref2 = _reference(x2, w2, b2, dim=-1)
    assert jnp.allclose(out2, ref2, atol=1e-5, rtol=1e-5)

    # --- test 3: dim = 1 (middle axis, no wrapper transposes) -----------
    x3 = jax.random.normal(k3, (2, 16, 8, 8), dtype=jnp.float32)
    w3 = jnp.ones((16,), jnp.float32) + 0.02 * jnp.arange(16, dtype=jnp.float32)
    b3 = jnp.full((16,), -0.1, jnp.float32)
    out3 = jax.block_until_ready(layer_norm(x3, w3, b3, dim=1, affine=True))
    ref3 = _reference(x3, w3, b3, dim=1)
    assert out3.shape == x3.shape and out3.dtype == x3.dtype
    assert jnp.allclose(out3, ref3, atol=1e-5, rtol=1e-5)

    print("KERNEL_OK")
</pallas_src>

<mosaic_0001>
module attributes {stable_mosaic.version = 11 : i64} {
  func.func @_layernorm_last_kernel(%arg0: i32, %arg1: memref<16x32xf32, #tpu.memory_space<vmem>>, %arg2: memref<1x32xf32, #tpu.memory_space<vmem>>, %arg3: memref<1x32xf32, #tpu.memory_space<vmem>>, %arg4: memref<16x32xf32, #tpu.memory_space<vmem>>) attributes {dimension_semantics = [#tpu.dimension_semantics<parallel>], iteration_bounds = array<i64: 1>, scalar_prefetch = 0 : i64, scratch_operands = 0 : i64, tpu.core_type = #tpu.core_type<tc>, window_params = [{transform_indices = @transform_0, window_bounds = array<i64: 16, 32>}, {pipeline_mode = #tpu.pipeline_mode<synchronous>, transform_indices = @transform_1, window_bounds = array<i64: 1, 32>}, {pipeline_mode = #tpu.pipeline_mode<synchronous>, transform_indices = @transform_2, window_bounds = array<i64: 1, 32>}, {transform_indices = @transform_3, window_bounds = array<i64: 16, 32>}]} {
    %c0 = arith.constant 0 : index
    %c0_0 = arith.constant 0 : index
    %0 = vector.load %arg1[%c0, %c0_0] : memref<16x32xf32, #tpu.memory_space<vmem>>, vector<16x32xf32>
    %cst = arith.constant dense<0.000000e+00> : vector<16xf32>
    %1 = vector.multi_reduction <add>, %0, %cst [1] : vector<16x32xf32> to vector<16xf32>
    %2 = vector.shape_cast %1 : vector<16xf32> to vector<16x1xf32>
    %cst_1 = arith.constant 3.200000e+01 : f32
    %3 = vector.broadcast %cst_1 : f32 to vector<16x1xf32>
    %4 = arith.divf %2, %3 : vector<16x1xf32>
    %5 = vector.broadcast %4 : vector<16x1xf32> to vector<16x32xf32>
    %6 = arith.subf %0, %5 : vector<16x32xf32>
    %7 = arith.mulf %6, %6 : vector<16x32xf32>
    %cst_2 = arith.constant dense<0.000000e+00> : vector<16xf32>
    %8 = vector.multi_reduction <add>, %7, %cst_2 [1] : vector<16x32xf32> to vector<16xf32>
    %9 = vector.shape_cast %8 : vector<16xf32> to vector<16x1xf32>
    %cst_3 = arith.constant 3.200000e+01 : f32
    %10 = vector.broadcast %cst_3 : f32 to vector<16x1xf32>
    %11 = arith.divf %9, %10 : vector<16x1xf32>
    %12 = math.rsqrt %11 : vector<16x1xf32>
    %c0_4 = arith.constant 0 : index
    %c0_5 = arith.constant 0 : index
    %13 = vector.load %arg2[%c0_4, %c0_5] : memref<1x32xf32, #tpu.memory_space<vmem>>, vector<1x32xf32>
    %c0_6 = arith.constant 0 : index
    %c0_7 = arith.constant 0 : index
    %14 = vector.load %arg3[%c0_6, %c0_7] : memref<1x32xf32, #tpu.memory_space<vmem>>, vector<1x32xf32>
    %15 = vector.broadcast %12 : vector<16x1xf32> to vector<16x32xf32>
    %16 = arith.mulf %6, %15 : vector<16x32xf32>
    %17 = vector.broadcast %13 : vector<1x32xf32> to vector<16x32xf32>
    %18 = arith.mulf %16, %17 : vector<16x32xf32>
    %19 = vector.broadcast %14 : vector<1x32xf32> to vector<16x32xf32>
    %20 = arith.addf %18, %19 : vector<16x32xf32>
    %c0_8 = arith.constant 0 : index
    %c0_9 = arith.constant 0 : index
    %21 = vector.load %arg4[%c0_8, %c0_9] : memref<16x32xf32, #tpu.memory_space<vmem>>, vector<16x32xf32>
    tpu.vector_store %arg4[%c0_8, %c0_9], %20 {strides = array<i32>} : memref<16x32xf32, #tpu.memory_space<vmem>>, vector<16x32xf32>,
    return
  }
  func.func @transform_0(%arg0: i32) -> (i32, i32) {
    %c0_i32 = arith.constant 0 : i32
    %c0_i32_0 = arith.constant 0 : i32
    return %arg0, %c0_i32 : i32, i32
  }
  func.func @transform_1(%arg0: i32) -> (i32, i32) {
    %c0_i32 = arith.constant 0 : i32
    %c0_i32_0 = arith.constant 0 : i32
    %c0_i32_1 = arith.constant 0 : i32
    return %c0_i32, %c0_i32_0 : i32, i32
  }
  func.func @transform_2(%arg0: i32) -> (i32, i32) {
    %c0_i32 = arith.constant 0 : i32
    %c0_i32_0 = arith.constant 0 : i32
    %c0_i32_1 = arith.constant 0 : i32
    return %c0_i32, %c0_i32_0 : i32, i32
  }
  func.func @transform_3(%arg0: i32) -> (i32, i32) {
    %c0_i32 = arith.constant 0 : i32
    %c0_i32_0 = arith.constant 0 : i32
    return %arg0, %c0_i32 : i32, i32
  }
}

</mosaic_0001>

<llo_original>
// kernel: tpu_custom_call.1
$region0: #{tpu_custom_call.1}
  #allocation0 [shape = 'u32[]', space=smem, size = 0x4, offset = 0x4, fixed_abs, tag = 'smem constant byte address 0x4 - core index']
  #allocation1 [shape = 'u32[144,128]{1,0:T(1,128)}', space=vmem, size = 0x12000, scoped, tag = 'internal scratch']
  %s0 = inlined_call_operand.hbm [shape: f32[16,32], index: 0, kind: input, shape index: {}]
  %s1 = inlined_call_operand.vmem [shape: f32[1,32], index: 1, kind: input, shape index: {}]
  %s2 = inlined_call_operand.vmem [shape: f32[1,32], index: 2, kind: input, shape index: {}]
  %s3 = inlined_call_operand.hbm [shape: f32[16,32], index: 3, kind: output, shape index: {}]
  %s4 = sld [smem:[#allocation0]]
  $region26: #{tpu_custom_call.1} parent=0
    _
  %s6 = ssub.s32 1, %s4
  %s7 = scalar_select 0, %s6, %s4
  $region1: #{tpu_custom_call.1} parent=0
    #allocation2 [shape = 'u8[8192]{0}', space=vmem, size = 0x2000, scoped, tag = 'input window, operand 0, single buffered']
    #allocation3 [shape = 's32[1]{0}', space=sflag, size = 0x4, scoped, tag = 'scoped memory for tpu_custom_call.1']
    #allocation4 [shape = 's32[1]{0}', space=sflag, size = 0x4, scoped, tag = 'scoped memory for tpu_custom_call.1']
    #allocation5 [shape = 'u8[8192]{0}', space=vmem, size = 0x2000, scoped, tag = 'output window, operand 0, single buffered']
    %8 = vsyncpa [#allocation3], 0
    %9 = vsyncpa [#allocation4], 0
    // Predicated region
    $region2: #{tpu_custom_call.1} parent=1 // pred_check
      _
    $region3: #{tpu_custom_call.1} parent=1 // pred_check_branch
      %11 = sbr.rel (0) target = $region5
    $region4: #{tpu_custom_call.1} parent=1 // pred_region
      %s13 = ssub.s32 256, 256
      %14 = vsyncadd [#allocation3], %s13
      %s15 = sshll.u32 [#allocation2], 4
      %s16 = int_to_ptr.vmem [resolvable:$true] %s15
      %21 = dma.hbm_to_vmem [thread:$0]  %s0, 256, %s16, [#allocation3], 128, 128, 8
    $region5: #{tpu_custom_call.1} parent=1 // pred_fallthru
      _
    // Predicated region
    $region6: #{tpu_custom_call.1} parent=1 // pred_check
      _
    $region7: #{tpu_custom_call.1} parent=1 // pred_check_branch
      %23 = sbr.rel (0) target = $region9
    $region8: #{tpu_custom_call.1} parent=1 // pred_region
      _
    $region9: #{tpu_custom_call.1} parent=1 // pred_fallthru
      _
    // Predicated region
    $region10: #{tpu_custom_call.1} parent=1 // pred_check
      _
    $region11: #{tpu_custom_call.1} parent=1 // pred_check_branch
      %25 = sbr.rel (0) target = $region13
    $region12: #{tpu_custom_call.1} parent=1 // pred_region
      _
    $region13: #{tpu_custom_call.1} parent=1 // pred_fallthru
      _
    // Predicated region
    $region14: #{tpu_custom_call.1} parent=1 // pred_check
      _
    $region15: #{tpu_custom_call.1} parent=1 // pred_check_branch
      %27 = sbr.rel (0) target = $region17
    $region16: #{tpu_custom_call.1} parent=1 // pred_region
      %28 = dma.done [#allocation3], 256
    $region17: #{tpu_custom_call.1} parent=1 // pred_fallthru
      _
    %v29 = vld [vmem:[#allocation2] sm:$0xff]
    %v30 = vld [vmem:[#allocation2 + $0x8] sm:$0xff]
    %vm31 = vcmask 261120
    %v32 = vsel %vm31, %v29, 0.0
    %33 = vadd.xlane.f32.xlu0 %v32
    %v34 = vpop.xlane.xlu0 %33
    %v35 = vsel %vm31, %v30, 0.0
    %36 = vadd.xlane.f32.xlu0 %v35
    %v37 = vpop.xlane.xlu0 %36
    %v38 = vrcp.pop 32.0
    %v39 = vmul.f32 %v34, %v38
    %v40 = vmul.f32 %v37, %v38
    %v41 = vsub.f32 %v29, %v39
    %v42 = vsub.f32 %v30, %v40
    %v43 = vmul.f32 %v41, %v41
    %v44 = vmul.f32 %v42, %v42
    %v45 = vsel %vm31, %v43, 0.0
    %46 = vadd.xlane.f32.xlu0 %v45
    %v47 = vpop.xlane.xlu0 %46
    %v48 = vsel %vm31, %v44, 0.0
    %49 = vadd.xlane.f32.xlu0 %v48
    %v50 = vpop.xlane.xlu0 %49
    %v51 = vmul.f32 %v47, %v38
    %v52 = vmul.f32 %v50, %v38
    %v53 = vrsqrt.pop %v51
    %v54 = vrsqrt.pop %v52
    %v55 = vld [vmem:[%s1] sm:$0x1]
    %v56 = vld [vmem:[%s2] sm:$0x1]
    %v57 = vmul.f32 %v41, %v53
    %v58 = vmul.f32 %v42, %v54
    %v60 = vlaneseq
    %v61 = vshrl.u32 %v60, 7
    %v62 = vsub.s32 0, %v61
    %v63 = vrot.slane %v55, %v62
    %v65 = vmul.f32 %v57, %v63
    %v66 = vmul.f32 %v58, %v63
    %v68 = vlaneseq
    %v69 = vshrl.u32 %v68, 7
    %v70 = vsub.s32 0, %v69
    %v71 = vrot.slane %v56, %v70
    %v73 = vadd.f32 %v65, %v71
    %v74 = vadd.f32 %v66, %v71
    %75 = vst.msk [vmem:[#allocation5] sm:$0xff] %vm31, %v73
    %76 = vst.msk [vmem:[#allocation5 + $0x8] sm:$0xff] %vm31, %v74
    // Predicated region
    $region18: #{tpu_custom_call.1} parent=1 // pred_check
      _
    $region19: #{tpu_custom_call.1} parent=1 // pred_check_branch
      %78 = sbr.rel (0) target = $region21
    $region20: #{tpu_custom_call.1} parent=1 // pred_region
      %s80 = ssub.s32 256, 256
      %81 = vsyncadd [#allocation4], %s80
      %s82 = sshll.u32 [#allocation5], 4
      %s83 = int_to_ptr.vmem [resolvable:$true] %s82
      %88 = dma.vmem_to_hbm [thread:$0]  %s83, 256, %s3, [#allocation4], 128, 128, 8
    $region21: #{tpu_custom_call.1} parent=1 // pred_fallthru
      _
    // Predicated region
    $region22: #{tpu_custom_call.1} parent=1 // pred_check
      _
    $region23: #{tpu_custom_call.1} parent=1 // pred_check_branch
      %90 = sbr.rel (0) target = $region25
    $region24: #{tpu_custom_call.1} parent=1 // pred_region
      %91 = dma.done [#allocation4], 256
    $region25: #{tpu_custom_call.1} parent=1 // pred_fallthru
      _
    %92 = vsyncpa [#allocation3], 1
    %93 = vsyncpa [#allocation4], 1

</llo_original>
